<compile_context>
chip_gen: v5e
topology: v5e:2x2
jax: 0.10.0
libtpu: 0.0.40
codegen_flags: <defaults>
</compile_context>

<pallas_src>
import functools

import jax
import jax.numpy as jnp
from jax.experimental import pallas as pl
from jax.experimental.pallas import tpu as pltpu

HIDDEN_SIZE = 128   # module-level constant in the reference script
_LEAKY_SLOPE = 0.01  # F.leaky_relu default


def _round_up(n, m):
    return ((n + m - 1) // m) * m


def _leaky_relu(x):
    # max(x, slope*x) == leaky_relu(x) for 0 < slope < 1 (mul+max, no cmp/select).
    return jnp.maximum(x, _LEAKY_SLOPE * x)


def _mlp_kernel(x_ref, w1_ref, b1_ref, w2_ref, b2_ref, w3_ref, b3_ref, o_ref):
    # One (TM, input_size) tile of rows -> one (TM, out_size) tile of outputs.
    h = jnp.dot(x_ref[...], w1_ref[...], preferred_element_type=jnp.float32)
    h = _leaky_relu(h + b1_ref[...])

    h = jnp.dot(h, w2_ref[...], preferred_element_type=jnp.float32)
    h = _leaky_relu(h + b2_ref[...])

    h = jnp.dot(h, w3_ref[...], preferred_element_type=jnp.float32)
    h = _leaky_relu(h + b3_ref[...])

    o_ref[...] = h.astype(o_ref.dtype)


@functools.partial(jax.jit, static_argnames=("tile_m",))
def outputter_forward(x, w1, b1, w2, b2, w3, b3, *, tile_m=2048):
    """Pallas implementation of Outputter.forward.

    x : (batch, input_size)
    w1: (input_size, hidden), b1: (1, hidden)
    w2: (hidden, hidden),     b2: (1, hidden)
    w3: (hidden, output),     b3: (1, output)
    """
    batch, in_size = x.shape
    hidden = w1.shape[1]
    out_size = w3.shape[1]

    # --- M tiling: one big tile when the batch fits; otherwise an EVEN number
    # of tiles (balances v7x's 2 TensorCores), each <= tile_m rows.
    if batch <= tile_m:
        tm = _round_up(batch, 8)
    else:
        n_tiles = 2 * pl.cdiv(batch, 2 * tile_m)          # even tile count
        tm = _round_up(pl.cdiv(batch, n_tiles), 8)
    grid_m = pl.cdiv(batch, tm)  # tail block is masked by Pallas (no jnp.pad)

    # Row-tiled x / out; weights & biases pinned in VMEM via constant index_map.
    row_spec = pl.BlockSpec((tm, in_size), lambda i: (i, 0))
    out_spec = pl.BlockSpec((tm, out_size), lambda i: (i, 0))
    w1_spec = pl.BlockSpec((in_size, hidden), lambda i: (0, 0))
    b1_spec = pl.BlockSpec((1, hidden), lambda i: (0, 0))
    w2_spec = pl.BlockSpec((hidden, hidden), lambda i: (0, 0))
    b2_spec = pl.BlockSpec((1, hidden), lambda i: (0, 0))
    w3_spec = pl.BlockSpec((hidden, out_size), lambda i: (0, 0))
    b3_spec = pl.BlockSpec((1, out_size), lambda i: (0, 0))

    flops = 2 * batch * (in_size * hidden + hidden * hidden + hidden * out_size)
    bytes_accessed = 4 * (
        batch * in_size                   # x in
        + batch * out_size                # out
        + in_size * hidden + hidden       # w1, b1
        + hidden * hidden + hidden        # w2, b2
        + hidden * out_size + out_size    # w3, b3
    )

    out = pl.pallas_call(
        _mlp_kernel,
        out_shape=jax.ShapeDtypeStruct((batch, out_size), jnp.float32),
        grid=(grid_m,),
        in_specs=[row_spec, w1_spec, b1_spec, w2_spec, b2_spec, w3_spec, b3_spec],
        out_specs=out_spec,
        compiler_params=pltpu.CompilerParams(
            dimension_semantics=("parallel",),  # shards batch tiles across TCs on v7x
        ),
        cost_estimate=pl.CostEstimate(
            flops=int(flops), transcendentals=0, bytes_accessed=int(bytes_accessed)
        ),
    )(x, w1, b1, w2, b2, w3, b3)

    return out


def init_linear_params(key, in_features, out_features):
    """Deterministic init mimicking nn.Linear (uniform(-1/sqrt(in), 1/sqrt(in))).

    Returns weight already transposed to (in_features, out_features) and bias
    with shape (1, out_features) for in-kernel broadcasting.
    """
    kw, kb = jax.random.split(key)
    bound = 1.0 / jnp.sqrt(float(in_features))
    w = jax.random.uniform(
        kw, (in_features, out_features), jnp.float32, minval=-bound, maxval=bound
    )
    b = jax.random.uniform(
        kb, (1, out_features), jnp.float32, minval=-bound, maxval=bound
    )
    return w, b


def reference_forward(x, w1, b1, w2, b2, w3, b3):
    h = jax.nn.leaky_relu(x @ w1 + b1, _LEAKY_SLOPE)
    h = jax.nn.leaky_relu(h @ w2 + b2, _LEAKY_SLOPE)
    h = jax.nn.leaky_relu(h @ w3 + b3, _LEAKY_SLOPE)
    return h


if __name__ == "__main__":
    input_size = 32
    hidden_size = HIDDEN_SIZE
    output_size = 16

    key = jax.random.PRNGKey(0)
    kx, k1, k2, k3, kx2, kx3 = jax.random.split(key, 6)

    w1, b1 = init_linear_params(k1, input_size, hidden_size)
    w2, b2 = init_linear_params(k2, hidden_size, hidden_size)
    w3, b3 = init_linear_params(k3, hidden_size, output_size)

    # Small batch (single grid step).
    batch = 8
    x = jax.random.normal(kx, (batch, input_size), jnp.float32)
    out = jax.block_until_ready(outputter_forward(x, w1, b1, w2, b2, w3, b3))
    ref = reference_forward(x, w1, b1, w2, b2, w3, b3)
    assert out.shape == (batch, output_size)
    assert jnp.allclose(out, ref, atol=1e-5, rtol=1e-5)

    # Ragged small batch (not a multiple of 8): exercises in-tile tail masking.
    batch2 = 13
    x2 = jax.random.normal(kx2, (batch2, input_size), jnp.float32)
    out2 = jax.block_until_ready(outputter_forward(x2, w1, b1, w2, b2, w3, b3))
    ref2 = reference_forward(x2, w1, b1, w2, b2, w3, b3)
    assert out2.shape == (batch2, output_size)
    assert jnp.allclose(out2, ref2, atol=1e-5, rtol=1e-5)

    # Larger ragged batch: exercises multi-tile grid (even tile count, small
    # tile_m here to force grid > 1) and the masked tail block on x and out.
    batch3 = 1050
    x3 = jax.random.normal(kx3, (batch3, input_size), jnp.float32)
    out3 = jax.block_until_ready(
        outputter_forward(x3, w1, b1, w2, b2, w3, b3, tile_m=512)
    )
    ref3 = reference_forward(x3, w1, b1, w2, b2, w3, b3)
    assert out3.shape == (batch3, output_size)
    assert jnp.allclose(out3, ref3, atol=1e-5, rtol=1e-5)

    print("KERNEL_OK")
</pallas_src>

<mosaic_0001>
module attributes {stable_mosaic.version = 11 : i64} {
  func.func @_mlp_kernel(%arg0: i32, %arg1: memref<8x32xf32, #tpu.memory_space<vmem>>, %arg2: memref<32x128xf32, #tpu.memory_space<vmem>>, %arg3: memref<1x128xf32, #tpu.memory_space<vmem>>, %arg4: memref<128x128xf32, #tpu.memory_space<vmem>>, %arg5: memref<1x128xf32, #tpu.memory_space<vmem>>, %arg6: memref<128x16xf32, #tpu.memory_space<vmem>>, %arg7: memref<1x16xf32, #tpu.memory_space<vmem>>, %arg8: memref<8x16xf32, #tpu.memory_space<vmem>>) attributes {dimension_semantics = [#tpu.dimension_semantics<parallel>], iteration_bounds = array<i64: 1>, scalar_prefetch = 0 : i64, scratch_operands = 0 : i64, tpu.core_type = #tpu.core_type<tc>, window_params = [{transform_indices = @transform_0, window_bounds = array<i64: 8, 32>}, {pipeline_mode = #tpu.pipeline_mode<synchronous>, transform_indices = @transform_1, window_bounds = array<i64: 32, 128>}, {pipeline_mode = #tpu.pipeline_mode<synchronous>, transform_indices = @transform_2, window_bounds = array<i64: 1, 128>}, {pipeline_mode = #tpu.pipeline_mode<synchronous>, transform_indices = @transform_3, window_bounds = array<i64: 128, 128>}, {pipeline_mode = #tpu.pipeline_mode<synchronous>, transform_indices = @transform_4, window_bounds = array<i64: 1, 128>}, {pipeline_mode = #tpu.pipeline_mode<synchronous>, transform_indices = @transform_5, window_bounds = array<i64: 128, 16>}, {pipeline_mode = #tpu.pipeline_mode<synchronous>, transform_indices = @transform_6, window_bounds = array<i64: 1, 16>}, {transform_indices = @transform_7, window_bounds = array<i64: 8, 16>}]} {
    %c0 = arith.constant 0 : index
    %c0_0 = arith.constant 0 : index
    %0 = vector.load %arg1[%c0, %c0_0] : memref<8x32xf32, #tpu.memory_space<vmem>>, vector<8x32xf32>
    %c0_1 = arith.constant 0 : index
    %c0_2 = arith.constant 0 : index
    %1 = vector.load %arg2[%c0_1, %c0_2] : memref<32x128xf32, #tpu.memory_space<vmem>>, vector<32x128xf32>
    %cst = arith.constant dense<0.000000e+00> : vector<8x128xf32>
    %2 = tpu.matmul %0, %1, %cst {dimension_numbers = #tpu.dot_dimension_numbers<[1], [0], [0], [1], [0, 0, 1, 1], [], []>} : vector<8x32xf32>, vector<32x128xf32>, vector<8x128xf32> -> vector<8x128xf32>
    %c0_3 = arith.constant 0 : index
    %c0_4 = arith.constant 0 : index
    %3 = vector.load %arg3[%c0_3, %c0_4] : memref<1x128xf32, #tpu.memory_space<vmem>>, vector<1x128xf32>
    %4 = vector.broadcast %3 : vector<1x128xf32> to vector<8x128xf32>
    %5 = arith.addf %2, %4 : vector<8x128xf32>
    %cst_5 = arith.constant 0.00999999977 : f32
    %6 = vector.broadcast %cst_5 : f32 to vector<8x128xf32>
    %7 = arith.mulf %6, %5 : vector<8x128xf32>
    %8 = arith.maximumf %5, %7 : vector<8x128xf32>
    %c0_6 = arith.constant 0 : index
    %c0_7 = arith.constant 0 : index
    %9 = vector.load %arg4[%c0_6, %c0_7] : memref<128x128xf32, #tpu.memory_space<vmem>>, vector<128x128xf32>
    %cst_8 = arith.constant dense<0.000000e+00> : vector<8x128xf32>
    %10 = tpu.matmul %8, %9, %cst_8 {dimension_numbers = #tpu.dot_dimension_numbers<[1], [0], [0], [1], [0, 0, 1, 1], [], []>} : vector<8x128xf32>, vector<128x128xf32>, vector<8x128xf32> -> vector<8x128xf32>
    %c0_9 = arith.constant 0 : index
    %c0_10 = arith.constant 0 : index
    %11 = vector.load %arg5[%c0_9, %c0_10] : memref<1x128xf32, #tpu.memory_space<vmem>>, vector<1x128xf32>
    %12 = vector.broadcast %11 : vector<1x128xf32> to vector<8x128xf32>
    %13 = arith.addf %10, %12 : vector<8x128xf32>
    %cst_11 = arith.constant 0.00999999977 : f32
    %14 = vector.broadcast %cst_11 : f32 to vector<8x128xf32>
    %15 = arith.mulf %14, %13 : vector<8x128xf32>
    %16 = arith.maximumf %13, %15 : vector<8x128xf32>
    %c0_12 = arith.constant 0 : index
    %c0_13 = arith.constant 0 : index
    %17 = vector.load %arg6[%c0_12, %c0_13] : memref<128x16xf32, #tpu.memory_space<vmem>>, vector<128x16xf32>
    %cst_14 = arith.constant dense<0.000000e+00> : vector<8x16xf32>
    %18 = tpu.matmul %16, %17, %cst_14 {dimension_numbers = #tpu.dot_dimension_numbers<[1], [0], [0], [1], [0, 0, 1, 1], [], []>} : vector<8x128xf32>, vector<128x16xf32>, vector<8x16xf32> -> vector<8x16xf32>
    %c0_15 = arith.constant 0 : index
    %c0_16 = arith.constant 0 : index
    %19 = vector.load %arg7[%c0_15, %c0_16] : memref<1x16xf32, #tpu.memory_space<vmem>>, vector<1x16xf32>
    %20 = vector.broadcast %19 : vector<1x16xf32> to vector<8x16xf32>
    %21 = arith.addf %18, %20 : vector<8x16xf32>
    %cst_17 = arith.constant 0.00999999977 : f32
    %22 = vector.broadcast %cst_17 : f32 to vector<8x16xf32>
    %23 = arith.mulf %22, %21 : vector<8x16xf32>
    %24 = arith.maximumf %21, %23 : vector<8x16xf32>
    %c0_18 = arith.constant 0 : index
    %c0_19 = arith.constant 0 : index
    %25 = vector.load %arg8[%c0_18, %c0_19] : memref<8x16xf32, #tpu.memory_space<vmem>>, vector<8x16xf32>
    tpu.vector_store %arg8[%c0_18, %c0_19], %24 {strides = array<i32>} : memref<8x16xf32, #tpu.memory_space<vmem>>, vector<8x16xf32>,
    return
  }
  func.func @transform_0(%arg0: i32) -> (i32, i32) {
    %c0_i32 = arith.constant 0 : i32
    %c0_i32_0 = arith.constant 0 : i32
    return %arg0, %c0_i32 : i32, i32
  }
  func.func @transform_1(%arg0: i32) -> (i32, i32) {
    %c0_i32 = arith.constant 0 : i32
    %c0_i32_0 = arith.constant 0 : i32
    %c0_i32_1 = arith.constant 0 : i32
    return %c0_i32, %c0_i32_0 : i32, i32
  }
  func.func @transform_2(%arg0: i32) -> (i32, i32) {
    %c0_i32 = arith.constant 0 : i32
    %c0_i32_0 = arith.constant 0 : i32
    %c0_i32_1 = arith.constant 0 : i32
    return %c0_i32, %c0_i32_0 : i32, i32
  }
  func.func @transform_3(%arg0: i32) -> (i32, i32) {
    %c0_i32 = arith.constant 0 : i32
    %c0_i32_0 = arith.constant 0 : i32
    %c0_i32_1 = arith.constant 0 : i32
    return %c0_i32, %c0_i32_0 : i32, i32
  }
  func.func @transform_4(%arg0: i32) -> (i32, i32) {
    %c0_i32 = arith.constant 0 : i32
    %c0_i32_0 = arith.constant 0 : i32
    %c0_i32_1 = arith.constant 0 : i32
    return %c0_i32, %c0_i32_0 : i32, i32
  }
  func.func @transform_5(%arg0: i32) -> (i32, i32) {
    %c0_i32 = arith.constant 0 : i32
    %c0_i32_0 = arith.constant 0 : i32
    %c0_i32_1 = arith.constant 0 : i32
    return %c0_i32, %c0_i32_0 : i32, i32
  }
  func.func @transform_6(%arg0: i32) -> (i32, i32) {
    %c0_i32 = arith.constant 0 : i32
    %c0_i32_0 = arith.constant 0 : i32
    %c0_i32_1 = arith.constant 0 : i32
    return %c0_i32, %c0_i32_0 : i32, i32
  }
  func.func @transform_7(%arg0: i32) -> (i32, i32) {
    %c0_i32 = arith.constant 0 : i32
    %c0_i32_0 = arith.constant 0 : i32
    return %arg0, %c0_i32 : i32, i32
  }
}

</mosaic_0001>

<llo_original>
// kernel: outputter_forward.1
$region0: #{outputter_forward.1}
  #allocation0 [shape = 'u32[]', space=smem, size = 0x4, offset = 0x4, fixed_abs, tag = 'smem constant byte address 0x4 - core index']
  #allocation1 [shape = 'u32[72,128]{1,0:T(1,128)}', space=vmem, size = 0x9000, scoped, tag = 'internal scratch']
  %s0 = inlined_call_operand.vmem [shape: f32[8,32], index: 0, kind: input, shape index: {}]
  %s1 = inlined_call_operand.hbm [shape: f32[32,128], index: 1, kind: input, shape index: {}]
  %s2 = inlined_call_operand.vmem [shape: f32[1,128], index: 2, kind: input, shape index: {}]
  %s3 = inlined_call_operand.vmem [shape: f32[128,128], index: 3, kind: input, shape index: {}]
  %s4 = inlined_call_operand.vmem [shape: f32[1,128], index: 4, kind: input, shape index: {}]
  %s5 = inlined_call_operand.vmem [shape: f32[128,16], index: 5, kind: input, shape index: {}]
  %s6 = inlined_call_operand.vmem [shape: f32[1,16], index: 6, kind: input, shape index: {}]
  %s7 = inlined_call_operand.hbm [shape: f32[8,16], index: 7, kind: output, shape index: {}]
  %s8 = sld [smem:[#allocation0]]
  $region42: #{outputter_forward.1} parent=0
    _
  %s10 = ssub.s32 1, %s8
  %s11 = scalar_select 0, %s10, %s8
  $region1: #{outputter_forward.1} parent=0
    #allocation2 [shape = 'u8[16384]{0}', space=vmem, size = 0x4000, scoped, tag = 'input window, operand 1, single buffered']
    #allocation3 [shape = 's32[1]{0}', space=sflag, size = 0x4, scoped, tag = 'scoped memory for outputter_forward.1']
    #allocation4 [shape = 's32[1]{0}', space=sflag, size = 0x4, scoped, tag = 'scoped memory for outputter_forward.1']
    #allocation5 [shape = 'u8[4096]{0}', space=vmem, size = 0x1000, scoped, tag = 'output window, operand 0, single buffered']
    %12 = vsyncpa [#allocation3], 0
    %13 = vsyncpa [#allocation4], 0
    // Predicated region
    $region2: #{outputter_forward.1} parent=1 // pred_check
      _
    $region3: #{outputter_forward.1} parent=1 // pred_check_branch
      %15 = sbr.rel (0) target = $region5
    $region4: #{outputter_forward.1} parent=1 // pred_region
      _
    $region5: #{outputter_forward.1} parent=1 // pred_fallthru
      _
    // Predicated region
    $region6: #{outputter_forward.1} parent=1 // pred_check
      _
    $region7: #{outputter_forward.1} parent=1 // pred_check_branch
      %17 = sbr.rel (0) target = $region9
    $region8: #{outputter_forward.1} parent=1 // pred_region
      %19 = vsyncadd [#allocation3], 0
      %s20 = sshll.u32 %s1, 4
      %s21 = int_to_ptr.hbm [resolvable:$true] %s20
      %s22 = sshll.u32 [#allocation2], 4
      %s23 = int_to_ptr.vmem [resolvable:$true] %s22
      %28 = dma.hbm_to_vmem [thread:$0]  %s21, 512, %s23, [#allocation3], 128, 128, 8
    $region9: #{outputter_forward.1} parent=1 // pred_fallthru
      _
    // Predicated region
    $region10: #{outputter_forward.1} parent=1 // pred_check
      _
    $region11: #{outputter_forward.1} parent=1 // pred_check_branch
      %30 = sbr.rel (0) target = $region13
    $region12: #{outputter_forward.1} parent=1 // pred_region
      _
    $region13: #{outputter_forward.1} parent=1 // pred_fallthru
      _
    // Predicated region
    $region14: #{outputter_forward.1} parent=1 // pred_check
      _
    $region15: #{outputter_forward.1} parent=1 // pred_check_branch
      %32 = sbr.rel (0) target = $region17
    $region16: #{outputter_forward.1} parent=1 // pred_region
      _
    $region17: #{outputter_forward.1} parent=1 // pred_fallthru
      _
    // Predicated region
    $region18: #{outputter_forward.1} parent=1 // pred_check
      _
    $region19: #{outputter_forward.1} parent=1 // pred_check_branch
      %34 = sbr.rel (0) target = $region21
    $region20: #{outputter_forward.1} parent=1 // pred_region
      _
    $region21: #{outputter_forward.1} parent=1 // pred_fallthru
      _
    // Predicated region
    $region22: #{outputter_forward.1} parent=1 // pred_check
      _
    $region23: #{outputter_forward.1} parent=1 // pred_check_branch
      %36 = sbr.rel (0) target = $region25
    $region24: #{outputter_forward.1} parent=1 // pred_region
      _
    $region25: #{outputter_forward.1} parent=1 // pred_fallthru
      _
    // Predicated region
    $region26: #{outputter_forward.1} parent=1 // pred_check
      _
    $region27: #{outputter_forward.1} parent=1 // pred_check_branch
      %38 = sbr.rel (0) target = $region29
    $region28: #{outputter_forward.1} parent=1 // pred_region
      _
    $region29: #{outputter_forward.1} parent=1 // pred_fallthru
      _
    // Predicated region
    $region30: #{outputter_forward.1} parent=1 // pred_check
      _
    $region31: #{outputter_forward.1} parent=1 // pred_check_branch
      %40 = sbr.rel (0) target = $region33
    $region32: #{outputter_forward.1} parent=1 // pred_region
      %42 = dma.done [#allocation3], 512
    $region33: #{outputter_forward.1} parent=1 // pred_fallthru
      _
    %v43 = vld [vmem:[%s0] sm:$0xff]
    %v44 = vld [vmem:[#allocation2] sm:$0xff]
    %v45 = vld [vmem:[#allocation2 + $0x8] sm:$0xff]
    %v46 = vld [vmem:[#allocation2 + $0x10] sm:$0xff]
    %v47 = vld [vmem:[#allocation2 + $0x18] sm:$0xff]
    %v48 = vld [vmem:[%s2] sm:$0x1]
    %v50 = vperm.slane %v48, 0
    %vm52 = vcmask 261120
    %v54 = vsel %vm52, %v43, 0
    %56 = vmatpush.msra.mxu0 0.0
    %57 = vmatpush.msra.mxu0 0.0
    %58 = vmatpush.msra.mxu0 0.0
    %59 = vmatpush.msra.mxu0 0.0
    %60 = vmatpush.msra.mxu0 0.0
    %61 = vmatpush.msra.mxu0 0.0
    %62 = vmatpush.msra.mxu0 0.0
    %63 = vmatpush.msra.mxu0 0.0
    %64 = vmatpush.msra.mxu0 0.0
    %65 = vmatpush.msra.mxu0 0.0
    %66 = vmatpush.msra.mxu0 0.0
    %67 = vmatpush.msra.mxu0 0.0
    %68 = vmatpush.msra.mxu0 %v47
    %69 = vmatpush.msra.mxu0 %v46
    %70 = vmatpush.msra.mxu0 %v45
    %71 = vmatpush.msra.mxu0 %v44
    %72 = vmatmul.f32.gmra.mxu0 %v54
    %v73 = vpop.f32.mrf.mxu0
    %v74 = vadd.f32 %v50, %v73
    %75 = vdwg.mxu0
    %v76 = vmul.f32 %v74, 0.01
    %v77 = vmax.f32 %v74, %v76
    %v78 = vld [vmem:[%s3] sm:$0xff]
    %v79 = vld [vmem:[%s3 + $0x8] sm:$0xff]
    %v80 = vld [vmem:[%s3 + $0x10] sm:$0xff]
    %v81 = vld [vmem:[%s3 + $0x18] sm:$0xff]
    %v82 = vld [vmem:[%s3 + $0x20] sm:$0xff]
    %v83 = vld [vmem:[%s3 + $0x28] sm:$0xff]
    %v84 = vld [vmem:[%s3 + $0x30] sm:$0xff]
    %v85 = vld [vmem:[%s3 + $0x38] sm:$0xff]
    %v86 = vld [vmem:[%s3 + $0x40] sm:$0xff]
    %v87 = vld [vmem:[%s3 + $0x48] sm:$0xff]
    %v88 = vld [vmem:[%s3 + $0x50] sm:$0xff]
    %v89 = vld [vmem:[%s3 + $0x58] sm:$0xff]
    %v90 = vld [vmem:[%s3 + $0x60] sm:$0xff]
    %v91 = vld [vmem:[%s3 + $0x68] sm:$0xff]
    %v92 = vld [vmem:[%s3 + $0x70] sm:$0xff]
    %v93 = vld [vmem:[%s3 + $0x78] sm:$0xff]
    %v94 = vld [vmem:[%s4] sm:$0x1]
    %v96 = vperm.slane %v94, 0
    %98 = vmatpush.msra.mxu0 %v93
    %99 = vmatpush.msra.mxu0 %v92
    %100 = vmatpush.msra.mxu0 %v91
    %101 = vmatpush.msra.mxu0 %v90
    %102 = vmatpush.msra.mxu0 %v89
    %103 = vmatpush.msra.mxu0 %v88
    %104 = vmatpush.msra.mxu0 %v87
    %105 = vmatpush.msra.mxu0 %v86
    %106 = vmatpush.msra.mxu0 %v85
    %107 = vmatpush.msra.mxu0 %v84
    %108 = vmatpush.msra.mxu0 %v83
    %109 = vmatpush.msra.mxu0 %v82
    %110 = vmatpush.msra.mxu0 %v81
    %111 = vmatpush.msra.mxu0 %v80
    %112 = vmatpush.msra.mxu0 %v79
    %113 = vmatpush.msra.mxu0 %v78
    %114 = vmatmul.f32.gmra.mxu0 %v77
    %v115 = vpop.f32.mrf.mxu0
    %v116 = vadd.f32 %v96, %v115
    %117 = vdwg.mxu0
    %v118 = vmul.f32 %v116, 0.01
    %v119 = vmax.f32 %v116, %v118
    %v120 = vld [vmem:[%s5] sm:$0xff]
    %v121 = vld [vmem:[%s5 + $0x8] sm:$0xff]
    %v122 = vld [vmem:[%s5 + $0x10] sm:$0xff]
    %v123 = vld [vmem:[%s5 + $0x18] sm:$0xff]
    %v124 = vld [vmem:[%s5 + $0x20] sm:$0xff]
    %v125 = vld [vmem:[%s5 + $0x28] sm:$0xff]
    %v126 = vld [vmem:[%s5 + $0x30] sm:$0xff]
    %v127 = vld [vmem:[%s5 + $0x38] sm:$0xff]
    %v128 = vld [vmem:[%s5 + $0x40] sm:$0xff]
    %v129 = vld [vmem:[%s5 + $0x48] sm:$0xff]
    %v130 = vld [vmem:[%s5 + $0x50] sm:$0xff]
    %v131 = vld [vmem:[%s5 + $0x58] sm:$0xff]
    %v132 = vld [vmem:[%s5 + $0x60] sm:$0xff]
    %v133 = vld [vmem:[%s5 + $0x68] sm:$0xff]
    %v134 = vld [vmem:[%s5 + $0x70] sm:$0xff]
    %v135 = vld [vmem:[%s5 + $0x78] sm:$0xff]
    %v136 = vld [vmem:[%s6] sm:$0x1]
    %v138 = vperm.slane %v136, 0
    %140 = vmatpush.msra.mxu0 %v135
    %141 = vmatpush.msra.mxu0 %v134
    %142 = vmatpush.msra.mxu0 %v133
    %143 = vmatpush.msra.mxu0 %v132
    %144 = vmatpush.msra.mxu0 %v131
    %145 = vmatpush.msra.mxu0 %v130
    %146 = vmatpush.msra.mxu0 %v129
    %147 = vmatpush.msra.mxu0 %v128
    %148 = vmatpush.msra.mxu0 %v127
    %149 = vmatpush.msra.mxu0 %v126
    %150 = vmatpush.msra.mxu0 %v125
    %151 = vmatpush.msra.mxu0 %v124
    %152 = vmatpush.msra.mxu0 %v123
    %153 = vmatpush.msra.mxu0 %v122
    %154 = vmatpush.msra.mxu0 %v121
    %155 = vmatpush.msra.mxu0 %v120
    %156 = vmatmul.f32.gmra.mxu0 %v119
    %v157 = vpop.f32.mrf.mxu0
    %v158 = vadd.f32 %v138, %v157
    %159 = vdwg.mxu0
    %v160 = vmul.f32 %v158, 0.01
    %v161 = vmax.f32 %v158, %v160
    %vm162 = vcmask 130048
    %163 = vst.msk [vmem:[#allocation5] sm:$0xff] %vm162, %v161
    // Predicated region
    $region34: #{outputter_forward.1} parent=1 // pred_check
      _
    $region35: #{outputter_forward.1} parent=1 // pred_check_branch
      %165 = sbr.rel (0) target = $region37
    $region36: #{outputter_forward.1} parent=1 // pred_region
      %167 = vsyncadd [#allocation4], 0
      %s169 = sshll.u32 [#allocation5], 4
      %s170 = int_to_ptr.vmem [resolvable:$true] %s169
      %s171 = sshll.u32 %s7, 4
      %s172 = int_to_ptr.hbm [resolvable:$true] %s171
      %174 = dma.vmem_to_hbm [thread:$0]  %s170, 128, %s172, [#allocation4]
    $region37: #{outputter_forward.1} parent=1 // pred_fallthru
      _
    // Predicated region
    $region38: #{outputter_forward.1} parent=1 // pred_check
      _
    $region39: #{outputter_forward.1} parent=1 // pred_check_branch
      %176 = sbr.rel (0) target = $region41
    $region40: #{outputter_forward.1} parent=1 // pred_region
      %178 = dma.done [#allocation4], 128
    $region41: #{outputter_forward.1} parent=1 // pred_fallthru
      _
    %179 = vsyncpa [#allocation3], 1
    %180 = vsyncpa [#allocation4], 1

</llo_original>
